<compile_context>
chip_gen: v7x
topology: tpu7x:2x2x1
jax: 0.10.0
libtpu: 0.0.40
codegen_flags: <defaults>
</compile_context>

<pallas_src>
import functools

import jax
import jax.numpy as jnp
from jax.experimental import pallas as pl
from jax.experimental.pallas import tpu as pltpu


def _round_up(n, m):
    return ((n + m - 1) // m) * m


def _tiles_for(n, tm_max=256, tk_max=512):
    """Pick (n_pad, tm, tk) so tm | n_pad and tk | n_pad, adapting to small graphs."""
    n128 = _round_up(max(n, 1), 128)
    if n128 >= tk_max:
        # Large graph: fixed tiles; tm_max divides tk_max, so both divide n_pad.
        return _round_up(n, tk_max), tm_max, tk_max
    # Small graph: one tile along each node axis (n128 is a multiple of 8/128).
    return n128, n128, n128


def _ginconv_kernel(eps_ref, x_self_ref, adj_ref, x_agg_ref,
                    w1_ref, b1_ref, w2_ref, b2_ref,
                    out_ref, acc_ref, *, relu_out):
    """One GINConv: out = MLP((1 + eps) * x + adj @ x), tiled over (rows, cols)."""
    k = pl.program_id(1)

    @pl.when(k == 0)
    def _():
        acc_ref[...] = jnp.zeros_like(acc_ref)

    # Aggregation partial sum for this column tile (adj stored bf16, exact for
    # small-integer edge weights; cast to f32 so the aggregation matches the
    # f32 reference).
    acc_ref[...] += jnp.dot(adj_ref[...].astype(jnp.float32), x_agg_ref[...],
                            preferred_element_type=jnp.float32)

    @pl.when(k == pl.num_programs(1) - 1)
    def _():
        one_plus_eps = 1.0 + eps_ref[0]
        h = one_plus_eps * x_self_ref[...] + acc_ref[...]
        h = jnp.maximum(
            jnp.dot(h, w1_ref[...], preferred_element_type=jnp.float32) + b1_ref[...],
            0.0)
        h = jnp.dot(h, w2_ref[...], preferred_element_type=jnp.float32) + b2_ref[...]
        if relu_out:
            h = jnp.maximum(h, 0.0)
        out_ref[...] = h


def _ginconv(x, adj, eps, w1, b1, w2, b2, *, relu_out, tm, tk):
    """x: [Np, Fin] f32 (padded), adj: [Np, Np] bf16 (padded), eps: [1] f32."""
    n_pad, f_in = x.shape
    f_mid = w1.shape[1]
    f_out = w2.shape[1]
    grid = (n_pad // tm, n_pad // tk)

    flops = (2 * n_pad * n_pad * f_in          # aggregation
             + 2 * n_pad * f_in * f_mid        # linear 1
             + 2 * n_pad * f_mid * f_out)      # linear 2
    bytes_accessed = (adj.size * adj.dtype.itemsize
                      + (grid[0] + 1) * x.size * 4   # x re-read per row stripe (agg) + self rows
                      + n_pad * f_out * 4            # output
                      + (w1.size + b1.size + w2.size + b2.size) * 4)

    return pl.pallas_call(
        functools.partial(_ginconv_kernel, relu_out=relu_out),
        out_shape=jax.ShapeDtypeStruct((n_pad, f_out), jnp.float32),
        grid_spec=pltpu.PrefetchScalarGridSpec(
            num_scalar_prefetch=0,
            grid=grid,
            in_specs=[
                pl.BlockSpec(memory_space=pltpu.MemorySpace.SMEM),   # eps scalar
                pl.BlockSpec((tm, f_in), lambda i, k: (i, 0)),       # x rows (self term)
                pl.BlockSpec((tm, tk), lambda i, k: (i, k)),         # adj tile
                pl.BlockSpec((tk, f_in), lambda i, k: (k, 0)),       # x rows (aggregation)
                pl.BlockSpec((f_in, f_mid), lambda i, k: (0, 0)),    # w1 (VMEM-resident)
                pl.BlockSpec((1, f_mid), lambda i, k: (0, 0)),       # b1
                pl.BlockSpec((f_mid, f_out), lambda i, k: (0, 0)),   # w2
                pl.BlockSpec((1, f_out), lambda i, k: (0, 0)),       # b2
            ],
            out_specs=pl.BlockSpec((tm, f_out), lambda i, k: (i, 0)),
            scratch_shapes=[pltpu.VMEM((tm, f_in), jnp.float32)],    # agg accumulator
        ),
        compiler_params=pltpu.CompilerParams(
            dimension_semantics=("parallel", "arbitrary"),
            vmem_limit_bytes=32 * 1024 * 1024,
        ),
        cost_estimate=pl.CostEstimate(flops=flops, transcendentals=0,
                                      bytes_accessed=bytes_accessed),
    )(eps, x, adj, x, w1, b1, w2, b2)


def gin_forward(x, adj, eps, params, *, tm_max=256, tk_max=512):
    """x: [N, nfeat] f32, adj: [N, N] f32 (dense, adj[dst, src]=edge weight), eps: [2] f32."""
    w1, b1, w2, b2, w3, b3, w4, b4 = params
    n, nfeat = x.shape
    nhid = w1.shape[1]
    nclass = w4.shape[1]

    lane = 128
    n_pad, tm, tk = _tiles_for(n, tm_max, tk_max)
    fp = _round_up(nfeat, lane)
    hp = _round_up(nhid, lane)
    cp = _round_up(nclass, lane)

    # Zero-padding is exact: padded adj rows/cols are 0, padded weight rows/cols
    # and bias lanes are 0, so real rows/cols of every intermediate are unchanged.
    xp = jnp.zeros((n_pad, fp), jnp.float32).at[:n, :nfeat].set(x)
    adjp = (jnp.zeros((n_pad, n_pad), jnp.bfloat16)
            .at[:n, :n].set(adj.astype(jnp.bfloat16)))

    def pad2(a, r, c):
        return jnp.zeros((r, c), jnp.float32).at[:a.shape[0], :a.shape[1]].set(a)

    w1p, b1p = pad2(w1, fp, hp), pad2(b1, 1, hp)
    w2p, b2p = pad2(w2, hp, hp), pad2(b2, 1, hp)
    w3p, b3p = pad2(w3, hp, hp), pad2(b3, 1, hp)
    w4p, b4p = pad2(w4, hp, cp), pad2(b4, 1, cp)

    # conv1: MLP = Linear-ReLU-Linear-ReLU
    h = _ginconv(xp, adjp, eps[0:1], w1p, b1p, w2p, b2p,
                 relu_out=True, tm=tm, tk=tk)
    # F.dropout(p=0.5) is identity in eval/inference mode (predict() calls self.eval()).
    # TODO(synk): add stochastic dropout via pltpu.prng_random_bits for training mode.
    # conv2: MLP = Linear-ReLU-Linear
    out = _ginconv(h, adjp, eps[1:2], w3p, b3p, w4p, b4p,
                   relu_out=False, tm=tm, tk=tk)
    return out[:n, :nclass]


def init_params(key, nfeat, nhid, nclass):
    """Deterministic synthetic params (PyTorch Linear equivalent: W [in,out], b [1,out])."""
    ks = jax.random.split(key, 8)

    def lin(kw, kb, fan_in, fan_out):
        bound = 1.0 / jnp.sqrt(fan_in)
        w = jax.random.uniform(kw, (fan_in, fan_out), jnp.float32, -bound, bound)
        b = jax.random.uniform(kb, (1, fan_out), jnp.float32, -bound, bound)
        return w, b

    w1, b1 = lin(ks[0], ks[1], nfeat, nhid)   # conv1.nn[0]
    w2, b2 = lin(ks[2], ks[3], nhid, nhid)    # conv1.nn[2]
    w3, b3 = lin(ks[4], ks[5], nhid, nhid)    # conv2.nn[0]
    w4, b4 = lin(ks[6], ks[7], nhid, nclass)  # conv2.nn[2]
    return (w1, b1, w2, b2, w3, b3, w4, b4)


def reference_forward(x, adj, eps, params):
    w1, b1, w2, b2, w3, b3, w4, b4 = params
    h = (1.0 + eps[0]) * x + adj @ x
    h = jnp.maximum(h @ w1 + b1, 0.0)
    h = jnp.maximum(h @ w2 + b2, 0.0)
    g = (1.0 + eps[1]) * h + adj @ h
    g = jnp.maximum(g @ w3 + b3, 0.0)
    return g @ w4 + b4


def _ring_graph(n):
    """Deterministic bidirectional ring -> edge_index [2, 2n] (src, dst)."""
    src = jnp.concatenate([jnp.arange(n), (jnp.arange(n) + 1) % n])
    dst = jnp.concatenate([(jnp.arange(n) + 1) % n, jnp.arange(n)])
    return jnp.stack([src, dst], axis=0)


def _dense_adj(edge_index, n):
    """adj[dst, src] = (number of edges src->dst), so sum-aggregation == adj @ x."""
    return (jnp.zeros((n, n), jnp.float32)
            .at[edge_index[1], edge_index[0]].add(1.0))


if __name__ == "__main__":
    key = jax.random.PRNGKey(0)

    # ---- Test 1: tiny graph (single-tile path), shapes matching the module ----
    N, nfeat, nhid, nclass = 8, 16, 32, 4
    kx, kp, kx2, kp2, ke = jax.random.split(key, 5)

    x = jax.random.normal(kx, (N, nfeat), jnp.float32)
    adj = _dense_adj(_ring_graph(N), N)
    eps = jnp.zeros((2,), jnp.float32)   # GINConv eps=0.0, train_eps=True
    params = init_params(kp, nfeat, nhid, nclass)

    out = jax.block_until_ready(gin_forward(x, adj, eps, params))
    ref = reference_forward(x, adj, eps, params)
    assert out.shape == (N, nclass)
    assert jnp.allclose(out, ref, atol=1e-4, rtol=1e-4), "mismatch vs JAX reference (small)"

    # ---- Test 2: larger graph exercising the multi-tile accumulator path ----
    N2, nfeat2, nhid2, nclass2 = 600, 20, 50, 7
    x2 = jax.random.normal(kx2, (N2, nfeat2), jnp.float32)
    # Ring plus a few deterministic random chords (duplicates allowed; weights add).
    chords = jax.random.randint(ke, (2, 256), 0, N2)
    edge_index2 = jnp.concatenate([_ring_graph(N2), chords], axis=1)
    adj2 = _dense_adj(edge_index2, N2)
    eps2 = jnp.array([0.1, -0.05], jnp.float32)
    params2 = init_params(kp2, nfeat2, nhid2, nclass2)

    out2 = jax.block_until_ready(gin_forward(x2, adj2, eps2, params2))
    ref2 = reference_forward(x2, adj2, eps2, params2)
    assert out2.shape == (N2, nclass2)
    assert jnp.allclose(out2, ref2, atol=1e-3, rtol=1e-3), "mismatch vs JAX reference (large)"

    print("KERNEL_OK")
</pallas_src>

<mosaic_0001>
module attributes {stable_mosaic.version = 11 : i64} {
  func.func @_ginconv_kernel(%arg0: i32, %arg1: i32, %arg2: memref<1xf32, #tpu.memory_space<smem>>, %arg3: memref<128x128xf32, #tpu.memory_space<vmem>>, %arg4: memref<128x128xbf16, #tpu.memory_space<vmem>>, %arg5: memref<128x128xf32, #tpu.memory_space<vmem>>, %arg6: memref<128x128xf32, #tpu.memory_space<vmem>>, %arg7: memref<1x128xf32, #tpu.memory_space<vmem>>, %arg8: memref<128x128xf32, #tpu.memory_space<vmem>>, %arg9: memref<1x128xf32, #tpu.memory_space<vmem>>, %arg10: memref<128x128xf32, #tpu.memory_space<vmem>>, %arg11: memref<128x128xf32, #tpu.memory_space<vmem>>) attributes {dimension_semantics = [#tpu.dimension_semantics<parallel>, #tpu.dimension_semantics<arbitrary>], iteration_bounds = array<i64: 1, 1>, scalar_prefetch = 0 : i64, scratch_operands = 1 : i64, tpu.core_type = #tpu.core_type<tc>, window_params = [{transform_indices = @transform_0, window_bounds = array<i64: 1>}, {transform_indices = @transform_1, window_bounds = array<i64: 128, 128>}, {transform_indices = @transform_2, window_bounds = array<i64: 128, 128>}, {transform_indices = @transform_3, window_bounds = array<i64: 128, 128>}, {pipeline_mode = #tpu.pipeline_mode<synchronous>, transform_indices = @transform_4, window_bounds = array<i64: 128, 128>}, {pipeline_mode = #tpu.pipeline_mode<synchronous>, transform_indices = @transform_5, window_bounds = array<i64: 1, 128>}, {pipeline_mode = #tpu.pipeline_mode<synchronous>, transform_indices = @transform_6, window_bounds = array<i64: 128, 128>}, {pipeline_mode = #tpu.pipeline_mode<synchronous>, transform_indices = @transform_7, window_bounds = array<i64: 1, 128>}, {transform_indices = @transform_8, window_bounds = array<i64: 128, 128>}]} {
    %c0_i32 = arith.constant 0 : i32
    %0 = arith.cmpi eq, %arg1, %c0_i32 : i32
    %1 = arith.extui %0 : i1 to i32
    %c0_i32_0 = arith.constant 0 : i32
    %2 = arith.cmpi ne, %1, %c0_i32_0 : i32
    scf.if %2 {
      %cst_10 = arith.constant 0.000000e+00 : f32
      %13 = vector.broadcast %cst_10 : f32 to vector<128x128xf32>
      %c0_11 = arith.constant 0 : index
      %c0_12 = arith.constant 0 : index
      %14 = vector.load %arg11[%c0_11, %c0_12] : memref<128x128xf32, #tpu.memory_space<vmem>>, vector<128x128xf32>
      tpu.vector_store %arg11[%c0_11, %c0_12], %13 {strides = array<i32>} : memref<128x128xf32, #tpu.memory_space<vmem>>, vector<128x128xf32>,
    } else {
    }
    %c0 = arith.constant 0 : index
    %c0_1 = arith.constant 0 : index
    %3 = vector.load %arg11[%c0, %c0_1] : memref<128x128xf32, #tpu.memory_space<vmem>>, vector<128x128xf32>
    %c0_2 = arith.constant 0 : index
    %c0_3 = arith.constant 0 : index
    %4 = vector.load %arg4[%c0_2, %c0_3] : memref<128x128xbf16, #tpu.memory_space<vmem>>, vector<128x128xbf16>
    %5 = arith.extf %4 : vector<128x128xbf16> to vector<128x128xf32>
    %c0_4 = arith.constant 0 : index
    %c0_5 = arith.constant 0 : index
    %6 = vector.load %arg5[%c0_4, %c0_5] : memref<128x128xf32, #tpu.memory_space<vmem>>, vector<128x128xf32>
    %cst = arith.constant dense<0.000000e+00> : vector<128x128xf32>
    %7 = tpu.matmul %5, %6, %cst {dimension_numbers = #tpu.dot_dimension_numbers<[1], [0], [0], [1], [0, 0, 1, 1], [], []>} : vector<128x128xf32>, vector<128x128xf32>, vector<128x128xf32> -> vector<128x128xf32>
    %8 = arith.addf %3, %7 : vector<128x128xf32>
    %c0_6 = arith.constant 0 : index
    %c0_7 = arith.constant 0 : index
    %9 = vector.load %arg11[%c0_6, %c0_7] : memref<128x128xf32, #tpu.memory_space<vmem>>, vector<128x128xf32>
    tpu.vector_store %arg11[%c0_6, %c0_7], %8 {strides = array<i32>} : memref<128x128xf32, #tpu.memory_space<vmem>>, vector<128x128xf32>,
    %c0_i32_8 = arith.constant 0 : i32
    %10 = arith.cmpi eq, %arg1, %c0_i32_8 : i32
    %11 = arith.extui %10 : i1 to i32
    %c0_i32_9 = arith.constant 0 : i32
    %12 = arith.cmpi ne, %11, %c0_i32_9 : i32
    scf.if %12 {
      %c0_10 = arith.constant 0 : index
      %13 = memref.load %arg2[%c0_10] : memref<1xf32, #tpu.memory_space<smem>>
      %cst_11 = arith.constant 1.000000e+00 : f32
      %14 = arith.addf %cst_11, %13 : f32
      %c0_12 = arith.constant 0 : index
      %c0_13 = arith.constant 0 : index
      %15 = vector.load %arg3[%c0_12, %c0_13] : memref<128x128xf32, #tpu.memory_space<vmem>>, vector<128x128xf32>
      %16 = vector.broadcast %14 : f32 to vector<128x128xf32>
      %17 = arith.mulf %16, %15 : vector<128x128xf32>
      %c0_14 = arith.constant 0 : index
      %c0_15 = arith.constant 0 : index
      %18 = vector.load %arg11[%c0_14, %c0_15] : memref<128x128xf32, #tpu.memory_space<vmem>>, vector<128x128xf32>
      %19 = arith.addf %17, %18 : vector<128x128xf32>
      %c0_16 = arith.constant 0 : index
      %c0_17 = arith.constant 0 : index
      %20 = vector.load %arg6[%c0_16, %c0_17] : memref<128x128xf32, #tpu.memory_space<vmem>>, vector<128x128xf32>
      %cst_18 = arith.constant dense<0.000000e+00> : vector<128x128xf32>
      %21 = tpu.matmul %19, %20, %cst_18 {dimension_numbers = #tpu.dot_dimension_numbers<[1], [0], [0], [1], [0, 0, 1, 1], [], []>} : vector<128x128xf32>, vector<128x128xf32>, vector<128x128xf32> -> vector<128x128xf32>
      %c0_19 = arith.constant 0 : index
      %c0_20 = arith.constant 0 : index
      %22 = vector.load %arg7[%c0_19, %c0_20] : memref<1x128xf32, #tpu.memory_space<vmem>>, vector<1x128xf32>
      %23 = vector.broadcast %22 : vector<1x128xf32> to vector<128x128xf32>
      %24 = arith.addf %21, %23 : vector<128x128xf32>
      %cst_21 = arith.constant 0.000000e+00 : f32
      %25 = vector.broadcast %cst_21 : f32 to vector<128x128xf32>
      %26 = arith.maximumf %24, %25 : vector<128x128xf32>
      %c0_22 = arith.constant 0 : index
      %c0_23 = arith.constant 0 : index
      %27 = vector.load %arg8[%c0_22, %c0_23] : memref<128x128xf32, #tpu.memory_space<vmem>>, vector<128x128xf32>
      %cst_24 = arith.constant dense<0.000000e+00> : vector<128x128xf32>
      %28 = tpu.matmul %26, %27, %cst_24 {dimension_numbers = #tpu.dot_dimension_numbers<[1], [0], [0], [1], [0, 0, 1, 1], [], []>} : vector<128x128xf32>, vector<128x128xf32>, vector<128x128xf32> -> vector<128x128xf32>
      %c0_25 = arith.constant 0 : index
      %c0_26 = arith.constant 0 : index
      %29 = vector.load %arg9[%c0_25, %c0_26] : memref<1x128xf32, #tpu.memory_space<vmem>>, vector<1x128xf32>
      %30 = vector.broadcast %29 : vector<1x128xf32> to vector<128x128xf32>
      %31 = arith.addf %28, %30 : vector<128x128xf32>
      %cst_27 = arith.constant 0.000000e+00 : f32
      %32 = vector.broadcast %cst_27 : f32 to vector<128x128xf32>
      %33 = arith.maximumf %31, %32 : vector<128x128xf32>
      %c0_28 = arith.constant 0 : index
      %c0_29 = arith.constant 0 : index
      %34 = vector.load %arg10[%c0_28, %c0_29] : memref<128x128xf32, #tpu.memory_space<vmem>>, vector<128x128xf32>
      tpu.vector_store %arg10[%c0_28, %c0_29], %33 {strides = array<i32>} : memref<128x128xf32, #tpu.memory_space<vmem>>, vector<128x128xf32>,
    } else {
    }
    return
  }
  func.func @transform_0(%arg0: i32, %arg1: i32) -> i32 {
    %c0_i32 = arith.constant 0 : i32
    %c0_i32_0 = arith.constant 0 : i32
    return %c0_i32 : i32
  }
  func.func @transform_1(%arg0: i32, %arg1: i32) -> (i32, i32) {
    %c0_i32 = arith.constant 0 : i32
    %c0_i32_0 = arith.constant 0 : i32
    return %arg0, %c0_i32 : i32, i32
  }
  func.func @transform_2(%arg0: i32, %arg1: i32) -> (i32, i32) {
    %c0_i32 = arith.constant 0 : i32
    return %arg0, %arg1 : i32, i32
  }
  func.func @transform_3(%arg0: i32, %arg1: i32) -> (i32, i32) {
    %c0_i32 = arith.constant 0 : i32
    %c0_i32_0 = arith.constant 0 : i32
    return %arg1, %c0_i32 : i32, i32
  }
  func.func @transform_4(%arg0: i32, %arg1: i32) -> (i32, i32) {
    %c0_i32 = arith.constant 0 : i32
    %c0_i32_0 = arith.constant 0 : i32
    %c0_i32_1 = arith.constant 0 : i32
    return %c0_i32, %c0_i32_0 : i32, i32
  }
  func.func @transform_5(%arg0: i32, %arg1: i32) -> (i32, i32) {
    %c0_i32 = arith.constant 0 : i32
    %c0_i32_0 = arith.constant 0 : i32
    %c0_i32_1 = arith.constant 0 : i32
    return %c0_i32, %c0_i32_0 : i32, i32
  }
  func.func @transform_6(%arg0: i32, %arg1: i32) -> (i32, i32) {
    %c0_i32 = arith.constant 0 : i32
    %c0_i32_0 = arith.constant 0 : i32
    %c0_i32_1 = arith.constant 0 : i32
    return %c0_i32, %c0_i32_0 : i32, i32
  }
  func.func @transform_7(%arg0: i32, %arg1: i32) -> (i32, i32) {
    %c0_i32 = arith.constant 0 : i32
    %c0_i32_0 = arith.constant 0 : i32
    %c0_i32_1 = arith.constant 0 : i32
    return %c0_i32, %c0_i32_0 : i32, i32
  }
  func.func @transform_8(%arg0: i32, %arg1: i32) -> (i32, i32) {
    %c0_i32 = arith.constant 0 : i32
    %c0_i32_0 = arith.constant 0 : i32
    return %arg0, %c0_i32 : i32, i32
  }
}

</mosaic_0001>

<llo_original>
// kernel: tpu_custom_call.1
$region0: #{tpu_custom_call.1}
  #allocation0 [shape = 'u32[]', space=smem, size = 0x4, offset = 0x4, fixed_abs, tag = 'smem constant byte address 0x4 - core index']
  #allocation1 [shape = 'u32[144,128]{1,0:T(1,128)}', space=vmem, size = 0x12000, scoped, tag = 'internal scratch']
  #allocation2 [shape = 'f32[128,128]{1,0:T(8,128)}', space=vmem, size = 0x10000, scoped, tag = 'scratch operand']
  #allocation3 [shape = 'f32[1]{0:T(128)S(6)}', space=smem, size = 0x200, scoped, tag = 'scoped memory for tpu_custom_call.1']
  %s0 = inlined_call_operand.<no memory space> [shape: f32[1], index: 0, kind: input, shape index: {}]
  %s1 = inlined_call_operand.hbm [shape: f32[128,128], index: 1, kind: input, shape index: {}]
  %s2 = inlined_call_operand.hbm [shape: bf16[128,128], index: 2, kind: input, shape index: {}]
  %s3 = inlined_call_operand.hbm [shape: f32[128,128], index: 3, kind: input, shape index: {}]
  %s4 = inlined_call_operand.hbm [shape: f32[128,128], index: 4, kind: input, shape index: {}]
  %s5 = inlined_call_operand.vmem [shape: f32[1,128], index: 5, kind: input, shape index: {}]
  %s6 = inlined_call_operand.hbm [shape: f32[128,128], index: 6, kind: input, shape index: {}]
  %s7 = inlined_call_operand.vmem [shape: f32[1,128], index: 7, kind: input, shape index: {}]
  %s8 = inlined_call_operand.hbm [shape: f32[128,128], index: 8, kind: output, shape index: {}]
  %s9 = sld [smem:[#allocation0]]
  $region70: #{tpu_custom_call.1} parent=0
    _
  %s11 = ssub.s32 1, %s9
  %s12 = scalar_select 0, %s11, %s9
  %13 = sst [smem:[#allocation3]] %s0
  $region1: #{tpu_custom_call.1} parent=0
    #allocation4 [shape = 'u8[65536]{0}', space=vmem, size = 0x10000, scoped, tag = 'input window, operand 1, single buffered']
    #allocation5 [shape = 's32[1]{0}', space=sflag, size = 0x4, scoped, tag = 'scoped memory for tpu_custom_call.1']
    #allocation6 [shape = 's32[1]{0}', space=sflag, size = 0x4, scoped, tag = 'scoped memory for tpu_custom_call.1']
    #allocation7 [shape = 'u8[32768]{0}', space=vmem, size = 0x8000, scoped, tag = 'input window, operand 2, single buffered']
    #allocation8 [shape = 's32[1]{0}', space=sflag, size = 0x4, scoped, tag = 'scoped memory for tpu_custom_call.1']
    #allocation9 [shape = 'u8[65536]{0}', space=vmem, size = 0x10000, scoped, tag = 'input window, operand 3, single buffered']
    #allocation10 [shape = 'u8[65536]{0}', space=vmem, size = 0x10000, scoped, tag = 'input window, operand 4, single buffered']
    #allocation11 [shape = 's32[1]{0}', space=sflag, size = 0x4, scoped, tag = 'scoped memory for tpu_custom_call.1']
    #allocation12 [shape = 'u8[65536]{0}', space=vmem, size = 0x10000, scoped, tag = 'input window, operand 6, single buffered']
    #allocation13 [shape = 'u8[65536]{0}', space=vmem, size = 0x10000, scoped, tag = 'output window, operand 0, single buffered']
    %14 = vsyncpa [#allocation5], 0
    %15 = vsyncpa [#allocation8], 0
    %16 = vsyncpa [#allocation11], 0
    %17 = vsyncpa [#allocation6], 0
    // Predicated region
    $region2: #{tpu_custom_call.1} parent=1 // pred_check
      _
    $region3: #{tpu_custom_call.1} parent=1 // pred_check_branch
      %19 = sbr.rel (0) target = $region5
    $region4: #{tpu_custom_call.1} parent=1 // pred_region
      _
    $region5: #{tpu_custom_call.1} parent=1 // pred_fallthru
      _
    // Predicated region
    $region6: #{tpu_custom_call.1} parent=1 // pred_check
      _
    $region7: #{tpu_custom_call.1} parent=1 // pred_check_branch
      %21 = sbr.rel (0) target = $region9
    $region8: #{tpu_custom_call.1} parent=1 // pred_region
      %s23 = ssub.s32 2048, 2048
      %24 = vsyncadd [#allocation5], %s23
      %s25 = sshll.u32 [#allocation4], 4
      %s26 = int_to_ptr.vmem [resolvable:$true] %s25
      %31 = dma.hbm_to_vmem [thread:$0]  %s1, 2048, %s26, [#allocation5], 128, 128, 8
    $region9: #{tpu_custom_call.1} parent=1 // pred_fallthru
      _
    // Predicated region
    $region10: #{tpu_custom_call.1} parent=1 // pred_check
      _
    $region11: #{tpu_custom_call.1} parent=1 // pred_check_branch
      %33 = sbr.rel (0) target = $region13
    $region12: #{tpu_custom_call.1} parent=1 // pred_region
      %s35 = ssub.s32 1024, 1024
      %36 = vsyncadd [#allocation8], %s35
      %s37 = sshll.u32 [#allocation7], 4
      %s38 = int_to_ptr.vmem [resolvable:$true] %s37
      %43 = dma.hbm_to_vmem [thread:$0]  %s2, 1024, %s38, [#allocation8], 64, 64, 4
    $region13: #{tpu_custom_call.1} parent=1 // pred_fallthru
      _
    // Predicated region
    $region14: #{tpu_custom_call.1} parent=1 // pred_check
      _
    $region15: #{tpu_custom_call.1} parent=1 // pred_check_branch
      %45 = sbr.rel (0) target = $region17
    $region16: #{tpu_custom_call.1} parent=1 // pred_region
      %s47 = ssub.s32 2048, 2048
      %48 = vsyncadd [#allocation8], %s47
      %s49 = sshll.u32 [#allocation9], 4
      %s50 = int_to_ptr.vmem [resolvable:$true] %s49
      %55 = dma.hbm_to_vmem [thread:$0]  %s3, 2048, %s50, [#allocation8], 128, 128, 8
    $region17: #{tpu_custom_call.1} parent=1 // pred_fallthru
      _
    // Predicated region
    $region18: #{tpu_custom_call.1} parent=1 // pred_check
      _
    $region19: #{tpu_custom_call.1} parent=1 // pred_check_branch
      %57 = sbr.rel (0) target = $region21
    $region20: #{tpu_custom_call.1} parent=1 // pred_region
      %s59 = ssub.s32 2048, 2048
      %60 = vsyncadd [#allocation11], %s59
      %s61 = sshll.u32 [#allocation10], 4
      %s62 = int_to_ptr.vmem [resolvable:$true] %s61
      %67 = dma.hbm_to_vmem [thread:$0]  %s4, 2048, %s62, [#allocation11], 128, 128, 8
    $region21: #{tpu_custom_call.1} parent=1 // pred_fallthru
      _
    // Predicated region
    $region22: #{tpu_custom_call.1} parent=1 // pred_check
      _
    $region23: #{tpu_custom_call.1} parent=1 // pred_check_branch
      %69 = sbr.rel (0) target = $region25
    $region24: #{tpu_custom_call.1} parent=1 // pred_region
      _
    $region25: #{tpu_custom_call.1} parent=1 // pred_fallthru
      _
    // Predicated region
    $region26: #{tpu_custom_call.1} parent=1 // pred_check
      _
    $region27: #{tpu_custom_call.1} parent=1 // pred_check_branch
      %71 = sbr.rel (0) target = $region29
    $region28: #{tpu_custom_call.1} parent=1 // pred_region
      %s73 = ssub.s32 2048, 2048
      %74 = vsyncadd [#allocation11], %s73
      %s75 = sshll.u32 [#allocation12], 4
      %s76 = int_to_ptr.vmem [resolvable:$true] %s75
      %81 = dma.hbm_to_vmem [thread:$0]  %s6, 2048, %s76, [#allocation11], 128, 128, 8
    $region29: #{tpu_custom_call.1} parent=1 // pred_fallthru
      _
    // Predicated region
    $region30: #{tpu_custom_call.1} parent=1 // pred_check
      _
    $region31: #{tpu_custom_call.1} parent=1 // pred_check_branch
      %83 = sbr.rel (0) target = $region33
    $region32: #{tpu_custom_call.1} parent=1 // pred_region
      _
    $region33: #{tpu_custom_call.1} parent=1 // pred_fallthru
      _
    // Predicated region
    $region34: #{tpu_custom_call.1} parent=1 // pred_check
      _
    $region35: #{tpu_custom_call.1} parent=1 // pred_check_branch
      %85 = sbr.rel (0) target = $region37
    $region36: #{tpu_custom_call.1} parent=1 // pred_region
      %86 = dma.done [#allocation5], 2048
    $region37: #{tpu_custom_call.1} parent=1 // pred_fallthru
      _
    // Predicated region
    $region38: #{tpu_custom_call.1} parent=1 // pred_check
      _
    $region39: #{tpu_custom_call.1} parent=1 // pred_check_branch
      %88 = sbr.rel (0) target = $region41
    $region40: #{tpu_custom_call.1} parent=1 // pred_region
      %89 = dma.done [#allocation8], 1024
    $region41: #{tpu_custom_call.1} parent=1 // pred_fallthru
      _
    // Predicated region
    $region42: #{tpu_custom_call.1} parent=1 // pred_check
      _
    $region43: #{tpu_custom_call.1} parent=1 // pred_check_branch
      %91 = sbr.rel (0) target = $region45
    $region44: #{tpu_custom_call.1} parent=1 // pred_region
      %92 = dma.done [#allocation8], 2048
    $region45: #{tpu_custom_call.1} parent=1 // pred_fallthru
      _
    // Predicated region
    $region46: #{tpu_custom_call.1} parent=1 // pred_check
      _
    $region47: #{tpu_custom_call.1} parent=1 // pred_check_branch
      %94 = sbr.rel (0) target = $region49
    $region48: #{tpu_custom_call.1} parent=1 // pred_region
      %95 = dma.done [#allocation11], 2048
    $region49: #{tpu_custom_call.1} parent=1 // pred_fallthru
      _
    // Predicated region
    $region50: #{tpu_custom_call.1} parent=1 // pred_check
      _
    $region51: #{tpu_custom_call.1} parent=1 // pred_check_branch
      %97 = sbr.rel (0) target = $region53
    $region52: #{tpu_custom_call.1} parent=1 // pred_region
      %98 = dma.done [#allocation11], 2048
    $region53: #{tpu_custom_call.1} parent=1 // pred_fallthru
      _
    %p99 = scmp.eq.s32.totalorder 0, 0
    // Predicated region
    $region54: #{tpu_custom_call.1} parent=1 // pred_check
      %p100 = pneg %p99
    $region55: #{tpu_custom_call.1} parent=1 // pred_check_branch
      %102 = sbr.rel (%p100) target = $region57
    $region56: #{tpu_custom_call.1} parent=1 // pred_region
      %103 = vst [vmem:[#allocation2] sm:$0xff] 0.0
      %104 = vst [vmem:[#allocation2 + $0x8] sm:$0xff] 0.0
      %105 = vst [vmem:[#allocation2 + $0x10] sm:$0xff] 0.0
      %106 = vst [vmem:[#allocation2 + $0x18] sm:$0xff] 0.0
      %107 = vst [vmem:[#allocation2 + $0x20] sm:$0xff] 0.0
      %108 = vst [vmem:[#allocation2 + $0x28] sm:$0xff] 0.0
      %109 = vst [vmem:[#allocation2 + $0x30] sm:$0xff] 0.0
      %110 = vst [vmem:[#allocation2 + $0x38] sm:$0xff] 0.0
      %111 = vst [vmem:[#allocation2 + $0x40] sm:$0xff] 0.0
      %112 = vst [vmem:[#allocation2 + $0x48] sm:$0xff] 0.0
      %113 = vst [vmem:[#allocation2 + $0x50] sm:$0xff] 0.0
      %114 = vst [vmem:[#allocation2 + $0x58] sm:$0xff] 0.0
      %115 = vst [vmem:[#allocation2 + $0x60] sm:$0xff] 0.0
      %116 = vst [vmem:[#allocation2 + $0x68] sm:$0xff] 0.0
      %117 = vst [vmem:[#allocation2 + $0x70] sm:$0xff] 0.0
      %118 = vst [vmem:[#allocation2 + $0x78] sm:$0xff] 0.0
    $region57: #{tpu_custom_call.1} parent=1 // pred_fallthru
      _
    %v119 = vld [vmem:[#allocation2] sm:$0xff]
    %v120 = vld [vmem:[#allocation2 + $0x8] sm:$0xff]
    %v121 = vld [vmem:[#allocation2 + $0x10] sm:$0xff]
    %v122 = vld [vmem:[#allocation2 + $0x18] sm:$0xff]
    %v123 = vld [vmem:[#allocation2 + $0x20] sm:$0xff]
    %v124 = vld [vmem:[#allocation2 + $0x28] sm:$0xff]
    %v125 = vld [vmem:[#allocation2 + $0x30] sm:$0xff]
    %v126 = vld [vmem:[#allocation2 + $0x38] sm:$0xff]
    %v127 = vld [vmem:[#allocation2 + $0x40] sm:$0xff]
    %v128 = vld [vmem:[#allocation2 + $0x48] sm:$0xff]
    %v129 = vld [vmem:[#allocation2 + $0x50] sm:$0xff]
    %v130 = vld [vmem:[#allocation2 + $0x58] sm:$0xff]
    %v131 = vld [vmem:[#allocation2 + $0x60] sm:$0xff]
    %v132 = vld [vmem:[#allocation2 + $0x68] sm:$0xff]
    %v133 = vld [vmem:[#allocation2 + $0x70] sm:$0xff]
    %v134 = vld [vmem:[#allocation2 + $0x78] sm:$0xff]
    %v135 = vld [vmem:[#allocation7] sm:$0xf]
    %v136 = vld [vmem:[#allocation7 + $0x4] sm:$0xf]
    %v137 = vld [vmem:[#allocation7 + $0x8] sm:$0xf]
    %v138 = vld [vmem:[#allocation7 + $0xc] sm:$0xf]
    %v139 = vld [vmem:[#allocation7 + $0x10] sm:$0xf]
    %v140 = vld [vmem:[#allocation7 + $0x14] sm:$0xf]
    %v141 = vld [vmem:[#allocation7 + $0x18] sm:$0xf]
    %v142 = vld [vmem:[#allocation7 + $0x1c] sm:$0xf]
    %v143 = vld [vmem:[#allocation7 + $0x20] sm:$0xf]
    %v144 = vld [vmem:[#allocation7 + $0x24] sm:$0xf]
    %v145 = vld [vmem:[#allocation7 + $0x28] sm:$0xf]
    %v146 = vld [vmem:[#allocation7 + $0x2c] sm:$0xf]
    %v147 = vld [vmem:[#allocation7 + $0x30] sm:$0xf]
    %v148 = vld [vmem:[#allocation7 + $0x34] sm:$0xf]
    %v149 = vld [vmem:[#allocation7 + $0x38] sm:$0xf]
    %v150 = vld [vmem:[#allocation7 + $0x3c] sm:$0xf]
    %v151 = vunpack.c.l.bf16 %v135
    %v152 = vunpack.c.l.bf16 %v136
    %v153 = vunpack.c.l.bf16 %v137
    %v154 = vunpack.c.l.bf16 %v138
    %v155 = vunpack.c.l.bf16 %v139
    %v156 = vunpack.c.l.bf16 %v140
    %v157 = vunpack.c.l.bf16 %v141
    %v158 = vunpack.c.l.bf16 %v142
    %v159 = vunpack.c.l.bf16 %v143
    %v160 = vunpack.c.l.bf16 %v144
    %v161 = vunpack.c.l.bf16 %v145
    %v162 = vunpack.c.l.bf16 %v146
    %v163 = vunpack.c.l.bf16 %v147
    %v164 = vunpack.c.l.bf16 %v148
    %v165 = vunpack.c.l.bf16 %v149
    %v166 = vunpack.c.l.bf16 %v150
    %v167 = vld [vmem:[#allocation9] sm:$0xff]
    %v168 = vld [vmem:[#allocation9 + $0x8] sm:$0xff]
    %v169 = vld [vmem:[#allocation9 + $0x10] sm:$0xff]
    %v170 = vld [vmem:[#allocation9 + $0x18] sm:$0xff]
    %v171 = vld [vmem:[#allocation9 + $0x20] sm:$0xff]
    %v172 = vld [vmem:[#allocation9 + $0x28] sm:$0xff]
    %v173 = vld [vmem:[#allocation9 + $0x30] sm:$0xff]
    %v174 = vld [vmem:[#allocation9 + $0x38] sm:$0xff]
    %v175 = vld [vmem:[#allocation9 + $0x40] sm:$0xff]
    %v176 = vld [vmem:[#allocation9 + $0x48] sm:$0xff]
    %v177 = vld [vmem:[#allocation9 + $0x50] sm:$0xff]
    %v178 = vld [vmem:[#allocation9 + $0x58] sm:$0xff]
    %v179 = vld [vmem:[#allocation9 + $0x60] sm:$0xff]
    %v180 = vld [vmem:[#allocation9 + $0x68] sm:$0xff]
    %v181 = vld [vmem:[#allocation9 + $0x70] sm:$0xff]
    %v182 = vld [vmem:[#allocation9 + $0x78] sm:$0xff]
    %183 = vmatprep.subr.mxu0 0.0
    %184 = vmatpush1.msra.mxu0 %v167
    %185 = vmatprep.subr.mxu0 0.0
    %186 = vmatpush1.msra.mxu0 %v168
    %187 = vmatprep.subr.mxu0 0.0
    %188 = vmatpush1.msra.mxu0 %v169
    %189 = vmatprep.subr.mxu0 0.0
    %190 = vmatpush1.msra.mxu0 %v170
    %191 = vmatprep.subr.mxu0 0.0
    %192 = vmatpush1.msra.mxu0 %v171
    %193 = vmatprep.subr.mxu0 0.0
    %194 = vmatpush1.msra.mxu0 %v172
    %195 = vmatprep.subr.mxu0 0.0
    %196 = vmatpush1.msra.mxu0 %v173
    %197 = vmatprep.subr.mxu0 0.0
    %198 = vmatpush1.msra.mxu0 %v174
    %199 = vmatprep.subr.mxu0 0.0
    %200 = vmatpush1.msra.mxu0 %v175
    %201 = vmatprep.subr.mxu0 0.0
    %202 = vmatpush1.msra.mxu0 %v176
    %203 = vmatprep.subr.mxu0 0.0
    %204 = vmatpush1.msra.mxu0 %v177
    %205 = vmatprep.subr.mxu0 0.0
    %206 = vmatpush1.msra.mxu0 %v178
    %207 = vmatprep.subr.mxu0 0.0
    %208 = vmatpush1.msra.mxu0 %v179
    %209 = vmatprep.subr.mxu0 0.0
    %210 = vmatpush1.msra.mxu0 %v180
    %211 = vmatprep.subr.mxu0 0.0
    %212 = vmatpush1.msra.mxu0 %v181
    %213 = vmatprep.subr.mxu0 0.0
    %214 = vmatpush1.msra.mxu0 %v182
    %215 = vmatprep.subr.mxu0 0.0
    %216 = vmatpush1.msra.mxu0 0.0
    %217 = vmatprep.subr.mxu0 0.0
    %218 = vmatpush1.msra.mxu0 0.0
    %219 = vmatprep.subr.mxu0 0.0
    %220 = vmatpush1.msra.mxu0 0.0
    %221 = vmatprep.subr.mxu0 0.0
    %222 = vmatpush1.msra.mxu0 0.0
    %223 = vmatprep.subr.mxu0 0.0
    %224 = vmatpush1.msra.mxu0 0.0
    %225 = vmatprep.subr.mxu0 0.0
    %226 = vmatpush1.msra.mxu0 0.0
    %227 = vmatprep.subr.mxu0 0.0
    %228 = vmatpush1.msra.mxu0 0.0
    %229 = vmatprep.subr.mxu0 0.0
    %230 = vmatpush1.msra.mxu0 0.0
    %231 = vmatprep.subr.mxu0 0.0
    %232 = vmatpush1.msra.mxu0 0.0
    %233 = vmatprep.subr.mxu0 0.0
    %234 = vmatpush1.msra.mxu0 0.0
    %235 = vmatprep.subr.mxu0 0.0
    %236 = vmatpush1.msra.mxu0 0.0
    %237 = vmatprep.subr.mxu0 0.0
    %238 = vmatpush1.msra.mxu0 0.0
    %239 = vmatprep.subr.mxu0 0.0
    %240 = vmatpush1.msra.mxu0 0.0
    %241 = vmatprep.subr.mxu0 0.0
    %242 = vmatpush1.msra.mxu0 0.0
    %243 = vmatprep.subr.mxu0 0.0
    %244 = vmatpush1.msra.mxu0 0.0
    %245 = vmatprep.subr.mxu0 0.0
    %246 = vmatpush1.msra.mxu0 0.0
    %247 = vmatprep.mubr.f32.mxu0 0.0
    %248 = vmatmul.mubr.f32.gmra.mrb[0].mxu0 %v151
    %v249 = vpop.f32.mrb[0].mxu0
    %v250 = vadd.f32 0.0, %v249
    %v251 = vpop.f32.mrb[0].mxu0
    %252 = vmatprep.mubr.f32.mxu0 0.0
    %253 = vmatmul.mubr.f32.gmra.mrb[0].mxu0 %v152
    %v254 = vpop.f32.mrb[0].mxu0
    %v255 = vadd.f32 0.0, %v254
    %v256 = vpop.f32.mrb[0].mxu0
    %257 = vmatprep.mubr.f32.mxu0 0.0
    %258 = vmatmul.mubr.f32.gmra.mrb[0].mxu0 %v153
    %v259 = vpop.f32.mrb[0].mxu0
    %v260 = vadd.f32 0.0, %v259
    %v261 = vpop.f32.mrb[0].mxu0
    %262 = vmatprep.mubr.f32.mxu0 0.0
    %263 = vmatmul.mubr.f32.gmra.mrb[0].mxu0 %v154
    %v264 = vpop.f32.mrb[0].mxu0
    %v265 = vadd.f32 0.0, %v264
    %v266 = vpop.f32.mrb[0].mxu0
    %267 = vmatprep.mubr.f32.mxu0 0.0
    %268 = vmatmul.mubr.f32.gmra.mrb[0].mxu0 %v155
    %v269 = vpop.f32.mrb[0].mxu0
    %v270 = vadd.f32 0.0, %v269
    %v271 = vpop.f32.mrb[0].mxu0
    %272 = vmatprep.mubr.f32.mxu0 0.0
    %273 = vmatmul.mubr.f32.gmra.mrb[0].mxu0 %v156
    %v274 = vpop.f32.mrb[0].mxu0
    %v275 = vadd.f32 0.0, %v274
    %v276 = vpop.f32.mrb[0].mxu0
    %277 = vmatprep.mubr.f32.mxu0 0.0
    %278 = vmatmul.mubr.f32.gmra.mrb[0].mxu0 %v157
    %v279 = vpop.f32.mrb[0].mxu0
    %v280 = vadd.f32 0.0, %v279
    %v281 = vpop.f32.mrb[0].mxu0
    %282 = vmatprep.mubr.f32.mxu0 0.0
    %283 = vmatmul.mubr.f32.gmra.mrb[0].mxu0 %v158
    %v284 = vpop.f32.mrb[0].mxu0
    %v285 = vadd.f32 0.0, %v284
    %v286 = vpop.f32.mrb[0].mxu0
    %287 = vmatprep.mubr.f32.mxu0 0.0
    %288 = vmatmul.mubr.f32.gmra.mrb[0].mxu0 %v159
    %v289 = vpop.f32.mrb[0].mxu0
    %v290 = vadd.f32 0.0, %v289
    %v291 = vpop.f32.mrb[0].mxu0
    %292 = vmatprep.mubr.f32.mxu0 0.0
    %293 = vmatmul.mubr.f32.gmra.mrb[0].mxu0 %v160
    %v294 = vpop.f32.mrb[0].mxu0
    %v295 = vadd.f32 0.0, %v294
    %v296 = vpop.f32.mrb[0].mxu0
    %297 = vmatprep.mubr.f32.mxu0 0.0
    %298 = vmatmul.mubr.f32.gmra.mrb[0].mxu0 %v161
    %v299 = vpop.f32.mrb[0].mxu0
    %v300 = vadd.f32 0.0, %v299
    %v301 = vpop.f32.mrb[0].mxu0
    %302 = vmatprep.mubr.f32.mxu0 0.0
    %303 = vmatmul.mubr.f32.gmra.mrb[0].mxu0 %v162
    %v304 = vpop.f32.mrb[0].mxu0
    %v305 = vadd.f32 0.0, %v304
    %v306 = vpop.f32.mrb[0].mxu0
    %307 = vmatprep.mubr.f32.mxu0 0.0
    %308 = vmatmul.mubr.f32.gmra.mrb[0].mxu0 %v163
    %v309 = vpop.f32.mrb[0].mxu0
    %v310 = vadd.f32 0.0, %v309
    %v311 = vpop.f32.mrb[0].mxu0
    %312 = vmatprep.mubr.f32.mxu0 0.0
    %313 = vmatmul.mubr.f32.gmra.mrb[0].mxu0 %v164
    %v314 = vpop.f32.mrb[0].mxu0
    %v315 = vadd.f32 0.0, %v314
    %v316 = vpop.f32.mrb[0].mxu0
    %317 = vmatprep.mubr.f32.mxu0 0.0
    %318 = vmatmul.mubr.f32.gmra.mrb[0].mxu0 %v165
    %v319 = vpop.f32.mrb[0].mxu0
    %v320 = vadd.f32 0.0, %v319
    %v321 = vpop.f32.mrb[0].mxu0
    %322 = vmatprep.mubr.f32.mxu0 0.0
    %323 = vmatmul.mubr.f32.gmra.mrb[0].mxu0 %v166
    %v324 = vpop.f32.mrb[0].mxu0
    %v325 = vadd.f32 0.0, %v324
    %v326 = vpop.f32.mrb[0].mxu0
    %327 = vdwg.mxu0
    %v328 = vadd.f32 %v119, %v250
    %v329 = vadd.f32 %v120, %v255
    %v330 = vadd.f32 %v121, %v260
    %v331 = vadd.f32 %v122, %v265
    %v332 = vadd.f32 %v123, %v270
    %v333 = vadd.f32 %v124, %v275
    %v334 = vadd.f32 %v125, %v280
    %v335 = vadd.f32 %v126, %v285
    %v336 = vadd.f32 %v127, %v290
    %v337 = vadd.f32 %v128, %v295
    %v338 = vadd.f32 %v129, %v300
    %v339 = vadd.f32 %v130, %v305
    %v340 = vadd.f32 %v131, %v310
    %v341 = vadd.f32 %v132, %v315
    %v342 = vadd.f32 %v133, %v320
    %v343 = vadd.f32 %v134, %v325
    %344 = vst [vmem:[#allocation2] sm:$0xff] %v328
    %345 = vst [vmem:[#allocation2 + $0x8] sm:$0xff] %v329
    %346 = vst [vmem:[#allocation2 + $0x10] sm:$0xff] %v330
    %347 = vst [vmem:[#allocation2 + $0x18] sm:$0xff] %v331
    %348 = vst [vmem:[#allocation2 + $0x20] sm:$0xff] %v332
    %349 = vst [vmem:[#allocation2 + $0x28] sm:$0xff] %v333
    %350 = vst [vmem:[#allocation2 + $0x30] sm:$0xff] %v334
    %351 = vst [vmem:[#allocation2 + $0x38] sm:$0xff] %v335
    %352 = vst [vmem:[#allocation2 + $0x40] sm:$0xff] %v336
    %353 = vst [vmem:[#allocation2 + $0x48] sm:$0xff] %v337
    %354 = vst [vmem:[#allocation2 + $0x50] sm:$0xff] %v338
    %355 = vst [vmem:[#allocation2 + $0x58] sm:$0xff] %v339
    %356 = vst [vmem:[#allocation2 + $0x60] sm:$0xff] %v340
    %357 = vst [vmem:[#allocation2 + $0x68] sm:$0xff] %v341
    %358 = vst [vmem:[#allocation2 + $0x70] sm:$0xff] %v342
    %359 = vst [vmem:[#allocation2 + $0x78] sm:$0xff] %v343
    // Predicated region
    $region58: #{tpu_custom_call.1} parent=1 // pred_check
      %p360 = pneg %p99
    $region59: #{tpu_custom_call.1} parent=1 // pred_check_branch
      %362 = sbr.rel (%p360) target = $region61
    $region60: #{tpu_custom_call.1} parent=1 // pred_region
      %s363 = sld [smem:[#allocation3]]
      %s364 = sadd.f32 %s363, 1.0
      %v365 = vld [vmem:[#allocation4] sm:$0xff]
      %v366 = vld [vmem:[#allocation4 + $0x8] sm:$0xff]
      %v367 = vld [vmem:[#allocation4 + $0x10] sm:$0xff]
      %v368 = vld [vmem:[#allocation4 + $0x18] sm:$0xff]
      %v369 = vld [vmem:[#allocation4 + $0x20] sm:$0xff]
      %v370 = vld [vmem:[#allocation4 + $0x28] sm:$0xff]
      %v371 = vld [vmem:[#allocation4 + $0x30] sm:$0xff]
      %v372 = vld [vmem:[#allocation4 + $0x38] sm:$0xff]
      %v373 = vld [vmem:[#allocation4 + $0x40] sm:$0xff]
      %v374 = vld [vmem:[#allocation4 + $0x48] sm:$0xff]
      %v375 = vld [vmem:[#allocation4 + $0x50] sm:$0xff]
      %v376 = vld [vmem:[#allocation4 + $0x58] sm:$0xff]
      %v377 = vld [vmem:[#allocation4 + $0x60] sm:$0xff]
      %v378 = vld [vmem:[#allocation4 + $0x68] sm:$0xff]
      %v379 = vld [vmem:[#allocation4 + $0x70] sm:$0xff]
      %v380 = vld [vmem:[#allocation4 + $0x78] sm:$0xff]
      %v381 = vstv %s364
      %v382 = vmul.f32 %v381, %v365
      %v383 = vmul.f32 %v381, %v366
      %v384 = vmul.f32 %v381, %v367
      %v385 = vmul.f32 %v381, %v368
      %v386 = vmul.f32 %v381, %v369
      %v387 = vmul.f32 %v381, %v370
      %v388 = vmul.f32 %v381, %v371
      %v389 = vmul.f32 %v381, %v372
      %v390 = vmul.f32 %v381, %v373
      %v391 = vmul.f32 %v381, %v374
      %v392 = vmul.f32 %v381, %v375
      %v393 = vmul.f32 %v381, %v376
      %v394 = vmul.f32 %v381, %v377
      %v395 = vmul.f32 %v381, %v378
      %v396 = vmul.f32 %v381, %v379
      %v397 = vmul.f32 %v381, %v380
      %v398 = vld [vmem:[#allocation2] sm:$0xff]
      %v399 = vld [vmem:[#allocation2 + $0x8] sm:$0xff]
      %v400 = vld [vmem:[#allocation2 + $0x10] sm:$0xff]
      %v401 = vld [vmem:[#allocation2 + $0x18] sm:$0xff]
      %v402 = vld [vmem:[#allocation2 + $0x20] sm:$0xff]
      %v403 = vld [vmem:[#allocation2 + $0x28] sm:$0xff]
      %v404 = vld [vmem:[#allocation2 + $0x30] sm:$0xff]
      %v405 = vld [vmem:[#allocation2 + $0x38] sm:$0xff]
      %v406 = vld [vmem:[#allocation2 + $0x40] sm:$0xff]
      %v407 = vld [vmem:[#allocation2 + $0x48] sm:$0xff]
      %v408 = vld [vmem:[#allocation2 + $0x50] sm:$0xff]
      %v409 = vld [vmem:[#allocation2 + $0x58] sm:$0xff]
      %v410 = vld [vmem:[#allocation2 + $0x60] sm:$0xff]
      %v411 = vld [vmem:[#allocation2 + $0x68] sm:$0xff]
      %v412 = vld [vmem:[#allocation2 + $0x70] sm:$0xff]
      %v413 = vld [vmem:[#allocation2 + $0x78] sm:$0xff]
      %v414 = vadd.f32 %v382, %v398
      %v415 = vadd.f32 %v383, %v399
      %v416 = vadd.f32 %v384, %v400
      %v417 = vadd.f32 %v385, %v401
      %v418 = vadd.f32 %v386, %v402
      %v419 = vadd.f32 %v387, %v403
      %v420 = vadd.f32 %v388, %v404
      %v421 = vadd.f32 %v389, %v405
      %v422 = vadd.f32 %v390, %v406
      %v423 = vadd.f32 %v391, %v407
      %v424 = vadd.f32 %v392, %v408
      %v425 = vadd.f32 %v393, %v409
      %v426 = vadd.f32 %v394, %v410
      %v427 = vadd.f32 %v395, %v411
      %v428 = vadd.f32 %v396, %v412
      %v429 = vadd.f32 %v397, %v413
      %v430 = vld [vmem:[#allocation10] sm:$0xff]
      %v431 = vld [vmem:[#allocation10 + $0x8] sm:$0xff]
      %v432 = vld [vmem:[#allocation10 + $0x10] sm:$0xff]
      %v433 = vld [vmem:[#allocation10 + $0x18] sm:$0xff]
      %v434 = vld [vmem:[#allocation10 + $0x20] sm:$0xff]
      %v435 = vld [vmem:[#allocation10 + $0x28] sm:$0xff]
      %v436 = vld [vmem:[#allocation10 + $0x30] sm:$0xff]
      %v437 = vld [vmem:[#allocation10 + $0x38] sm:$0xff]
      %v438 = vld [vmem:[#allocation10 + $0x40] sm:$0xff]
      %v439 = vld [vmem:[#allocation10 + $0x48] sm:$0xff]
      %v440 = vld [vmem:[#allocation10 + $0x50] sm:$0xff]
      %v441 = vld [vmem:[#allocation10 + $0x58] sm:$0xff]
      %v442 = vld [vmem:[#allocation10 + $0x60] sm:$0xff]
      %v443 = vld [vmem:[#allocation10 + $0x68] sm:$0xff]
      %v444 = vld [vmem:[#allocation10 + $0x70] sm:$0xff]
      %v445 = vld [vmem:[#allocation10 + $0x78] sm:$0xff]
      %v446 = vld [vmem:[%s5] sm:$0x1]
      %v448 = vlaneseq
      %v449 = vshrl.u32 %v448, 7
      %v450 = vsub.s32 0, %v449
      %v451 = vrot.slane %v446, %v450
      %453 = vmatprep.subr.mxu0 0.0
      %454 = vmatpush1.msra.mxu0 %v430
      %455 = vmatprep.subr.mxu0 0.0
      %456 = vmatpush1.msra.mxu0 %v431
      %457 = vmatprep.subr.mxu0 0.0
      %458 = vmatpush1.msra.mxu0 %v432
      %459 = vmatprep.subr.mxu0 0.0
      %460 = vmatpush1.msra.mxu0 %v433
      %461 = vmatprep.subr.mxu0 0.0
      %462 = vmatpush1.msra.mxu0 %v434
      %463 = vmatprep.subr.mxu0 0.0
      %464 = vmatpush1.msra.mxu0 %v435
      %465 = vmatprep.subr.mxu0 0.0
      %466 = vmatpush1.msra.mxu0 %v436
      %467 = vmatprep.subr.mxu0 0.0
      %468 = vmatpush1.msra.mxu0 %v437
      %469 = vmatprep.subr.mxu0 0.0
      %470 = vmatpush1.msra.mxu0 %v438
      %471 = vmatprep.subr.mxu0 0.0
      %472 = vmatpush1.msra.mxu0 %v439
      %473 = vmatprep.subr.mxu0 0.0
      %474 = vmatpush1.msra.mxu0 %v440
      %475 = vmatprep.subr.mxu0 0.0
      %476 = vmatpush1.msra.mxu0 %v441
      %477 = vmatprep.subr.mxu0 0.0
      %478 = vmatpush1.msra.mxu0 %v442
      %479 = vmatprep.subr.mxu0 0.0
      %480 = vmatpush1.msra.mxu0 %v443
      %481 = vmatprep.subr.mxu0 0.0
      %482 = vmatpush1.msra.mxu0 %v444
      %483 = vmatprep.subr.mxu0 0.0
      %484 = vmatpush1.msra.mxu0 %v445
      %485 = vmatprep.subr.mxu0 0.0
      %486 = vmatpush1.msra.mxu0 0.0
      %487 = vmatprep.subr.mxu0 0.0
      %488 = vmatpush1.msra.mxu0 0.0
      %489 = vmatprep.subr.mxu0 0.0
      %490 = vmatpush1.msra.mxu0 0.0
      %491 = vmatprep.subr.mxu0 0.0
      %492 = vmatpush1.msra.mxu0 0.0
      %493 = vmatprep.subr.mxu0 0.0
      %494 = vmatpush1.msra.mxu0 0.0
      %495 = vmatprep.subr.mxu0 0.0
      %496 = vmatpush1.msra.mxu0 0.0
      %497 = vmatprep.subr.mxu0 0.0
      %498 = vmatpush1.msra.mxu0 0.0
      %499 = vmatprep.subr.mxu0 0.0
      %500 = vmatpush1.msra.mxu0 0.0
      %501 = vmatprep.subr.mxu0 0.0
      %502 = vmatpush1.msra.mxu0 0.0
      %503 = vmatprep.subr.mxu0 0.0
      %504 = vmatpush1.msra.mxu0 0.0
      %505 = vmatprep.subr.mxu0 0.0
      %506 = vmatpush1.msra.mxu0 0.0
      %507 = vmatprep.subr.mxu0 0.0
      %508 = vmatpush1.msra.mxu0 0.0
      %509 = vmatprep.subr.mxu0 0.0
      %510 = vmatpush1.msra.mxu0 0.0
      %511 = vmatprep.subr.mxu0 0.0
      %512 = vmatpush1.msra.mxu0 0.0
      %513 = vmatprep.subr.mxu0 0.0
      %514 = vmatpush1.msra.mxu0 0.0
      %515 = vmatprep.subr.mxu0 0.0
      %516 = vmatpush1.msra.mxu0 0.0
      %517 = vmatprep.mubr.f32.mxu0 0.0
      %518 = vmatmul.mubr.f32.gmra.mrb[0].mxu0 %v414
      %v519 = vpop.f32.mrb[0].mxu0
      %v520 = vadd.f32 %v451, %v519
      %v521 = vpop.f32.mrb[0].mxu0
      %522 = vmatprep.mubr.f32.mxu0 0.0
      %523 = vmatmul.mubr.f32.gmra.mrb[0].mxu0 %v415
      %v524 = vpop.f32.mrb[0].mxu0
      %v525 = vadd.f32 %v451, %v524
      %v526 = vpop.f32.mrb[0].mxu0
      %527 = vmatprep.mubr.f32.mxu0 0.0
      %528 = vmatmul.mubr.f32.gmra.mrb[0].mxu0 %v416
      %v529 = vpop.f32.mrb[0].mxu0
      %v530 = vadd.f32 %v451, %v529
      %v531 = vpop.f32.mrb[0].mxu0
      %532 = vmatprep.mubr.f32.mxu0 0.0
      %533 = vmatmul.mubr.f32.gmra.mrb[0].mxu0 %v417
      %v534 = vpop.f32.mrb[0].mxu0
      %v535 = vadd.f32 %v451, %v534
      %v536 = vpop.f32.mrb[0].mxu0
      %537 = vmatprep.mubr.f32.mxu0 0.0
      %538 = vmatmul.mubr.f32.gmra.mrb[0].mxu0 %v418
      %v539 = vpop.f32.mrb[0].mxu0
      %v540 = vadd.f32 %v451, %v539
      %v541 = vpop.f32.mrb[0].mxu0
      %542 = vmatprep.mubr.f32.mxu0 0.0
      %543 = vmatmul.mubr.f32.gmra.mrb[0].mxu0 %v419
      %v544 = vpop.f32.mrb[0].mxu0
      %v545 = vadd.f32 %v451, %v544
      %v546 = vpop.f32.mrb[0].mxu0
      %547 = vmatprep.mubr.f32.mxu0 0.0
      %548 = vmatmul.mubr.f32.gmra.mrb[0].mxu0 %v420
      %v549 = vpop.f32.mrb[0].mxu0
      %v550 = vadd.f32 %v451, %v549
      %v551 = vpop.f32.mrb[0].mxu0
      %552 = vmatprep.mubr.f32.mxu0 0.0
      %553 = vmatmul.mubr.f32.gmra.mrb[0].mxu0 %v421
      %v554 = vpop.f32.mrb[0].mxu0
      %v555 = vadd.f32 %v451, %v554
      %v556 = vpop.f32.mrb[0].mxu0
      %557 = vmatprep.mubr.f32.mxu0 0.0
      %558 = vmatmul.mubr.f32.gmra.mrb[0].mxu0 %v422
      %v559 = vpop.f32.mrb[0].mxu0
      %v560 = vadd.f32 %v451, %v559
      %v561 = vpop.f32.mrb[0].mxu0
      %562 = vmatprep.mubr.f32.mxu0 0.0
      %563 = vmatmul.mubr.f32.gmra.mrb[0].mxu0 %v423
      %v564 = vpop.f32.mrb[0].mxu0
      %v565 = vadd.f32 %v451, %v564
      %v566 = vpop.f32.mrb[0].mxu0
      %567 = vmatprep.mubr.f32.mxu0 0.0
      %568 = vmatmul.mubr.f32.gmra.mrb[0].mxu0 %v424
      %v569 = vpop.f32.mrb[0].mxu0
      %v570 = vadd.f32 %v451, %v569
      %v571 = vpop.f32.mrb[0].mxu0
      %572 = vmatprep.mubr.f32.mxu0 0.0
      %573 = vmatmul.mubr.f32.gmra.mrb[0].mxu0 %v425
      %v574 = vpop.f32.mrb[0].mxu0
      %v575 = vadd.f32 %v451, %v574
      %v576 = vpop.f32.mrb[0].mxu0
      %577 = vmatprep.mubr.f32.mxu0 0.0
      %578 = vmatmul.mubr.f32.gmra.mrb[0].mxu0 %v426
      %v579 = vpop.f32.mrb[0].mxu0
      %v580 = vadd.f32 %v451, %v579
      %v581 = vpop.f32.mrb[0].mxu0
      %582 = vmatprep.mubr.f32.mxu0 0.0
      %583 = vmatmul.mubr.f32.gmra.mrb[0].mxu0 %v427
      %v584 = vpop.f32.mrb[0].mxu0
      %v585 = vadd.f32 %v451, %v584
      %v586 = vpop.f32.mrb[0].mxu0
      %587 = vmatprep.mubr.f32.mxu0 0.0
      %588 = vmatmul.mubr.f32.gmra.mrb[0].mxu0 %v428
      %v589 = vpop.f32.mrb[0].mxu0
      %v590 = vadd.f32 %v451, %v589
      %v591 = vpop.f32.mrb[0].mxu0
      %592 = vmatprep.mubr.f32.mxu0 0.0
      %593 = vmatmul.mubr.f32.gmra.mrb[0].mxu0 %v429
      %v594 = vpop.f32.mrb[0].mxu0
      %v595 = vadd.f32 %v451, %v594
      %v596 = vpop.f32.mrb[0].mxu0
      %597 = vdwg.mxu0
      %v598 = vmax.f32 %v520, 0.0
      %v599 = vmax.f32 %v525, 0.0
      %v600 = vmax.f32 %v530, 0.0
      %v601 = vmax.f32 %v535, 0.0
      %v602 = vmax.f32 %v540, 0.0
      %v603 = vmax.f32 %v545, 0.0
      %v604 = vmax.f32 %v550, 0.0
      %v605 = vmax.f32 %v555, 0.0
      %v606 = vmax.f32 %v560, 0.0
      %v607 = vmax.f32 %v565, 0.0
      %v608 = vmax.f32 %v570, 0.0
      %v609 = vmax.f32 %v575, 0.0
      %v610 = vmax.f32 %v580, 0.0
      %v611 = vmax.f32 %v585, 0.0
      %v612 = vmax.f32 %v590, 0.0
      %v613 = vmax.f32 %v595, 0.0
      %v614 = vld [vmem:[#allocation12] sm:$0xff]
      %v615 = vld [vmem:[#allocation12 + $0x8] sm:$0xff]
      %v616 = vld [vmem:[#allocation12 + $0x10] sm:$0xff]
      %v617 = vld [vmem:[#allocation12 + $0x18] sm:$0xff]
      %v618 = vld [vmem:[#allocation12 + $0x20] sm:$0xff]
      %v619 = vld [vmem:[#allocation12 + $0x28] sm:$0xff]
      %v620 = vld [vmem:[#allocation12 + $0x30] sm:$0xff]
      %v621 = vld [vmem:[#allocation12 + $0x38] sm:$0xff]
      %v622 = vld [vmem:[#allocation12 + $0x40] sm:$0xff]
      %v623 = vld [vmem:[#allocation12 + $0x48] sm:$0xff]
      %v624 = vld [vmem:[#allocation12 + $0x50] sm:$0xff]
      %v625 = vld [vmem:[#allocation12 + $0x58] sm:$0xff]
      %v626 = vld [vmem:[#allocation12 + $0x60] sm:$0xff]
      %v627 = vld [vmem:[#allocation12 + $0x68] sm:$0xff]
      %v628 = vld [vmem:[#allocation12 + $0x70] sm:$0xff]
      %v629 = vld [vmem:[#allocation12 + $0x78] sm:$0xff]
      %v630 = vld [vmem:[%s7] sm:$0x1]
      %v632 = vlaneseq
      %v633 = vshrl.u32 %v632, 7
      %v634 = vsub.s32 0, %v633
      %v635 = vrot.slane %v630, %v634
      %637 = vmatprep.subr.mxu0 0.0
      %638 = vmatpush1.msra.mxu0 %v614
      %639 = vmatprep.subr.mxu0 0.0
      %640 = vmatpush1.msra.mxu0 %v615
      %641 = vmatprep.subr.mxu0 0.0
      %642 = vmatpush1.msra.mxu0 %v616
      %643 = vmatprep.subr.mxu0 0.0
      %644 = vmatpush1.msra.mxu0 %v617
      %645 = vmatprep.subr.mxu0 0.0
      %646 = vmatpush1.msra.mxu0 %v618
      %647 = vmatprep.subr.mxu0 0.0
      %648 = vmatpush1.msra.mxu0 %v619
      %649 = vmatprep.subr.mxu0 0.0
      %650 = vmatpush1.msra.mxu0 %v620
      %651 = vmatprep.subr.mxu0 0.0
      %652 = vmatpush1.msra.mxu0 %v621
      %653 = vmatprep.subr.mxu0 0.0
      %654 = vmatpush1.msra.mxu0 %v622
      %655 = vmatprep.subr.mxu0 0.0
      %656 = vmatpush1.msra.mxu0 %v623
      %657 = vmatprep.subr.mxu0 0.0
      %658 = vmatpush1.msra.mxu0 %v624
      %659 = vmatprep.subr.mxu0 0.0
      %660 = vmatpush1.msra.mxu0 %v625
      %661 = vmatprep.subr.mxu0 0.0
      %662 = vmatpush1.msra.mxu0 %v626
      %663 = vmatprep.subr.mxu0 0.0
      %664 = vmatpush1.msra.mxu0 %v627
      %665 = vmatprep.subr.mxu0 0.0
      %666 = vmatpush1.msra.mxu0 %v628
      %667 = vmatprep.subr.mxu0 0.0
      %668 = vmatpush1.msra.mxu0 %v629
      %669 = vmatprep.subr.mxu0 0.0
      %670 = vmatpush1.msra.mxu0 0.0
      %671 = vmatprep.subr.mxu0 0.0
      %672 = vmatpush1.msra.mxu0 0.0
      %673 = vmatprep.subr.mxu0 0.0
      %674 = vmatpush1.msra.mxu0 0.0
      %675 = vmatprep.subr.mxu0 0.0
      %676 = vmatpush1.msra.mxu0 0.0
      %677 = vmatprep.subr.mxu0 0.0
      %678 = vmatpush1.msra.mxu0 0.0
      %679 = vmatprep.subr.mxu0 0.0
      %680 = vmatpush1.msra.mxu0 0.0
      %681 = vmatprep.subr.mxu0 0.0
      %682 = vmatpush1.msra.mxu0 0.0
      %683 = vmatprep.subr.mxu0 0.0
      %684 = vmatpush1.msra.mxu0 0.0
      %685 = vmatprep.subr.mxu0 0.0
      %686 = vmatpush1.msra.mxu0 0.0
      %687 = vmatprep.subr.mxu0 0.0
      %688 = vmatpush1.msra.mxu0 0.0
      %689 = vmatprep.subr.mxu0 0.0
      %690 = vmatpush1.msra.mxu0 0.0
      %691 = vmatprep.subr.mxu0 0.0
      %692 = vmatpush1.msra.mxu0 0.0
      %693 = vmatprep.subr.mxu0 0.0
      %694 = vmatpush1.msra.mxu0 0.0
      %695 = vmatprep.subr.mxu0 0.0
      %696 = vmatpush1.msra.mxu0 0.0
      %697 = vmatprep.subr.mxu0 0.0
      %698 = vmatpush1.msra.mxu0 0.0
      %699 = vmatprep.subr.mxu0 0.0
      %700 = vmatpush1.msra.mxu0 0.0
      %701 = vmatprep.mubr.f32.mxu0 0.0
      %702 = vmatmul.mubr.f32.gmra.mrb[0].mxu0 %v598
      %v703 = vpop.f32.mrb[0].mxu0
      %v704 = vadd.f32 %v635, %v703
      %v705 = vpop.f32.mrb[0].mxu0
      %706 = vmatprep.mubr.f32.mxu0 0.0
      %707 = vmatmul.mubr.f32.gmra.mrb[0].mxu0 %v599
      %v708 = vpop.f32.mrb[0].mxu0
      %v709 = vadd.f32 %v635, %v708
      %v710 = vpop.f32.mrb[0].mxu0
      %711 = vmatprep.mubr.f32.mxu0 0.0
      %712 = vmatmul.mubr.f32.gmra.mrb[0].mxu0 %v600
      %v713 = vpop.f32.mrb[0].mxu0
      %v714 = vadd.f32 %v635, %v713
      %v715 = vpop.f32.mrb[0].mxu0
      %716 = vmatprep.mubr.f32.mxu0 0.0
      %717 = vmatmul.mubr.f32.gmra.mrb[0].mxu0 %v601
      %v718 = vpop.f32.mrb[0].mxu0
      %v719 = vadd.f32 %v635, %v718
      %v720 = vpop.f32.mrb[0].mxu0
      %721 = vmatprep.mubr.f32.mxu0 0.0
      %722 = vmatmul.mubr.f32.gmra.mrb[0].mxu0 %v602
      %v723 = vpop.f32.mrb[0].mxu0
      %v724 = vadd.f32 %v635, %v723
      %v725 = vpop.f32.mrb[0].mxu0
      %726 = vmatprep.mubr.f32.mxu0 0.0
      %727 = vmatmul.mubr.f32.gmra.mrb[0].mxu0 %v603
      %v728 = vpop.f32.mrb[0].mxu0
      %v729 = vadd.f32 %v635, %v728
      %v730 = vpop.f32.mrb[0].mxu0
      %731 = vmatprep.mubr.f32.mxu0 0.0
      %732 = vmatmul.mubr.f32.gmra.mrb[0].mxu0 %v604
      %v733 = vpop.f32.mrb[0].mxu0
      %v734 = vadd.f32 %v635, %v733
      %v735 = vpop.f32.mrb[0].mxu0
      %736 = vmatprep.mubr.f32.mxu0 0.0
      %737 = vmatmul.mubr.f32.gmra.mrb[0].mxu0 %v605
      %v738 = vpop.f32.mrb[0].mxu0
      %v739 = vadd.f32 %v635, %v738
      %v740 = vpop.f32.mrb[0].mxu0
      %741 = vmatprep.mubr.f32.mxu0 0.0
      %742 = vmatmul.mubr.f32.gmra.mrb[0].mxu0 %v606
      %v743 = vpop.f32.mrb[0].mxu0
      %v744 = vadd.f32 %v635, %v743
      %v745 = vpop.f32.mrb[0].mxu0
      %746 = vmatprep.mubr.f32.mxu0 0.0
      %747 = vmatmul.mubr.f32.gmra.mrb[0].mxu0 %v607
      %v748 = vpop.f32.mrb[0].mxu0
      %v749 = vadd.f32 %v635, %v748
      %v750 = vpop.f32.mrb[0].mxu0
      %751 = vmatprep.mubr.f32.mxu0 0.0
      %752 = vmatmul.mubr.f32.gmra.mrb[0].mxu0 %v608
      %v753 = vpop.f32.mrb[0].mxu0
      %v754 = vadd.f32 %v635, %v753
      %v755 = vpop.f32.mrb[0].mxu0
      %756 = vmatprep.mubr.f32.mxu0 0.0
      %757 = vmatmul.mubr.f32.gmra.mrb[0].mxu0 %v609
      %v758 = vpop.f32.mrb[0].mxu0
      %v759 = vadd.f32 %v635, %v758
      %v760 = vpop.f32.mrb[0].mxu0
      %761 = vmatprep.mubr.f32.mxu0 0.0
      %762 = vmatmul.mubr.f32.gmra.mrb[0].mxu0 %v610
      %v763 = vpop.f32.mrb[0].mxu0
      %v764 = vadd.f32 %v635, %v763
      %v765 = vpop.f32.mrb[0].mxu0
      %766 = vmatprep.mubr.f32.mxu0 0.0
      %767 = vmatmul.mubr.f32.gmra.mrb[0].mxu0 %v611
      %v768 = vpop.f32.mrb[0].mxu0
      %v769 = vadd.f32 %v635, %v768
      %v770 = vpop.f32.mrb[0].mxu0
      %771 = vmatprep.mubr.f32.mxu0 0.0
      %772 = vmatmul.mubr.f32.gmra.mrb[0].mxu0 %v612
      %v773 = vpop.f32.mrb[0].mxu0
      %v774 = vadd.f32 %v635, %v773
      %v775 = vpop.f32.mrb[0].mxu0
      %776 = vmatprep.mubr.f32.mxu0 0.0
      %777 = vmatmul.mubr.f32.gmra.mrb[0].mxu0 %v613
      %v778 = vpop.f32.mrb[0].mxu0
      %v779 = vadd.f32 %v635, %v778
      %v780 = vpop.f32.mrb[0].mxu0
      %781 = vdwg.mxu0
      %v782 = vmax.f32 %v704, 0.0
      %v783 = vmax.f32 %v709, 0.0
      %v784 = vmax.f32 %v714, 0.0
      %v785 = vmax.f32 %v719, 0.0
      %v786 = vmax.f32 %v724, 0.0
      %v787 = vmax.f32 %v729, 0.0
      %v788 = vmax.f32 %v734, 0.0
      %v789 = vmax.f32 %v739, 0.0
      %v790 = vmax.f32 %v744, 0.0
      %v791 = vmax.f32 %v749, 0.0
      %v792 = vmax.f32 %v754, 0.0
      %v793 = vmax.f32 %v759, 0.0
      %v794 = vmax.f32 %v764, 0.0
      %v795 = vmax.f32 %v769, 0.0
      %v796 = vmax.f32 %v774, 0.0
      %v797 = vmax.f32 %v779, 0.0
      %798 = vst [vmem:[#allocation13] sm:$0xff] %v782
      %799 = vst [vmem:[#allocation13 + $0x8] sm:$0xff] %v783
      %800 = vst [vmem:[#allocation13 + $0x10] sm:$0xff] %v784
      %801 = vst [vmem:[#allocation13 + $0x18] sm:$0xff] %v785
      %802 = vst [vmem:[#allocation13 + $0x20] sm:$0xff] %v786
      %803 = vst [vmem:[#allocation13 + $0x28] sm:$0xff] %v787
      %804 = vst [vmem:[#allocation13 + $0x30] sm:$0xff] %v788
      %805 = vst [vmem:[#allocation13 + $0x38] sm:$0xff] %v789
      %806 = vst [vmem:[#allocation13 + $0x40] sm:$0xff] %v790
      %807 = vst [vmem:[#allocation13 + $0x48] sm:$0xff] %v791
      %808 = vst [vmem:[#allocation13 + $0x50] sm:$0xff] %v792
      %809 = vst [vmem:[#allocation13 + $0x58] sm:$0xff] %v793
      %810 = vst [vmem:[#allocation13 + $0x60] sm:$0xff] %v794
      %811 = vst [vmem:[#allocation13 + $0x68] sm:$0xff] %v795
      %812 = vst [vmem:[#allocation13 + $0x70] sm:$0xff] %v796
      %813 = vst [vmem:[#allocation13 + $0x78] sm:$0xff] %v797
    $region61: #{tpu_custom_call.1} parent=1 // pred_fallthru
      _
    // Predicated region
    $region62: #{tpu_custom_call.1} parent=1 // pred_check
      _
    $region63: #{tpu_custom_call.1} parent=1 // pred_check_branch
      %815 = sbr.rel (0) target = $region65
    $region64: #{tpu_custom_call.1} parent=1 // pred_region
      %s817 = ssub.s32 2048, 2048
      %818 = vsyncadd [#allocation6], %s817
      %s819 = sshll.u32 [#allocation13], 4
      %s820 = int_to_ptr.vmem [resolvable:$true] %s819
      %825 = dma.vmem_to_hbm [thread:$0]  %s820, 2048, %s8, [#allocation6], 128, 128, 8
    $region65: #{tpu_custom_call.1} parent=1 // pred_fallthru
      _
    // Predicated region
    $region66: #{tpu_custom_call.1} parent=1 // pred_check
      _
    $region67: #{tpu_custom_call.1} parent=1 // pred_check_branch
      %827 = sbr.rel (0) target = $region69
    $region68: #{tpu_custom_call.1} parent=1 // pred_region
      %828 = dma.done [#allocation6], 2048
    $region69: #{tpu_custom_call.1} parent=1 // pred_fallthru
      _
    %829 = vsyncpa [#allocation5], 1
    %830 = vsyncpa [#allocation8], 1
    %831 = vsyncpa [#allocation11], 1
    %832 = vsyncpa [#allocation6], 1

</llo_original>
